<compile_context>
chip_gen: v7x
topology: tpu7x:2x2x1
jax: 0.10.0
libtpu: 0.0.40
codegen_flags: <defaults>
</compile_context>

<pallas_src>
import jax
import jax.numpy as jnp
from jax.experimental import pallas as pl
from jax.experimental.pallas import tpu as pltpu


def _three_plane_kernel(w_ref, b_ref, xt_ref, o_ref):
    # w_ref : (6,)        SMEM   flattened (3, 2) Linear weight, row-major
    # b_ref : (3,)        SMEM   bias
    # xt_ref: (2, TB)     VMEM   feature-major X block (N on the lane axis)
    # o_ref : (3, TB)     VMEM   feature-major output block
    x0 = xt_ref[0:1, :]  # (1, TB)
    x1 = xt_ref[1:2, :]  # (1, TB)

    rows = []
    for j in range(3):  # static unroll over the 3 output planes
        w0 = w_ref[2 * j + 0]
        w1 = w_ref[2 * j + 1]
        logits = x0 * w0 + x1 * w1 + b_ref[j]          # VPU mul/add, SMEM scalars
        rows.append(1.0 / (1.0 + jnp.exp(-logits)))    # exp on EUP
    o_ref[...] = jnp.concatenate(rows, axis=0)          # single lane-dense store


def three_plane_forward(x, weight, bias, *, block_n=8192):
    """sigmoid(x @ weight.T + bias) via a Pallas TPU kernel.

    x:      (N, 2) float32
    weight: (3, 2) float32   (PyTorch nn.Linear convention: (out, in))
    bias:   (3,)   float32
    returns (N, 3) float32
    """
    n, f_in = x.shape
    f_out = weight.shape[0]
    assert f_in == 2 and f_out == 3

    lane = 128
    # Lane-aligned block over N; cap at block_n rows per grid step.
    tb = min(block_n, max(lane, pl.cdiv(n, lane) * lane))
    tb = (tb // lane) * lane
    n_pad = pl.cdiv(n, tb) * tb
    n_blocks = n_pad // tb

    # Feature-major layout: N on the lane axis; pad N so every block is full.
    xt = x.T  # (2, N)
    if n_pad != n:
        xt = jnp.pad(xt, ((0, 0), (0, n_pad - n)))

    w_flat = weight.reshape(-1).astype(jnp.float32)  # (6,)
    b_flat = bias.astype(jnp.float32)                # (3,)

    out_t = pl.pallas_call(
        _three_plane_kernel,
        out_shape=jax.ShapeDtypeStruct((f_out, n_pad), jnp.float32),
        grid_spec=pltpu.PrefetchScalarGridSpec(
            num_scalar_prefetch=0,
            grid=(n_blocks,),
            in_specs=[
                pl.BlockSpec(memory_space=pltpu.MemorySpace.SMEM),   # weight (6,)
                pl.BlockSpec(memory_space=pltpu.MemorySpace.SMEM),   # bias   (3,)
                pl.BlockSpec((f_in, tb), lambda i: (0, i)),          # X^T block
            ],
            out_specs=pl.BlockSpec((f_out, tb), lambda i: (0, i)),
        ),
        compiler_params=pltpu.CompilerParams(
            dimension_semantics=("parallel",)),       # shards N across TCs on v7x
    )(w_flat, b_flat, xt)

    return out_t[:, :n].T  # back to (N, 3)


if __name__ == "__main__":
    key = jax.random.PRNGKey(0)
    k_x, k_w, k_b = jax.random.split(key, 3)

    # Small batch of 2-feature points (like the normalized fruit dataset).
    # N=200 is deliberately NOT a multiple of the block so padding is exercised;
    # block_n=128 forces a 2-step grid so tiling + the parallel axis are exercised.
    N, F_IN, F_OUT = 200, 2, 3
    x = jax.random.normal(k_x, (N, F_IN), dtype=jnp.float32)

    # Deterministic "Linear(2, 3)" init (uniform in +-1/sqrt(fan_in), like torch).
    bound = 1.0 / jnp.sqrt(jnp.float32(F_IN))
    weight = jax.random.uniform(k_w, (F_OUT, F_IN), jnp.float32, -bound, bound)
    bias = jax.random.uniform(k_b, (F_OUT,), jnp.float32, -bound, bound)

    out = three_plane_forward(x, weight, bias, block_n=128)
    out = jax.block_until_ready(out)

    # Reference check in plain JAX.
    ref = jax.nn.sigmoid(x @ weight.T + bias)
    assert out.shape == (N, F_OUT)
    assert jnp.allclose(out, ref, atol=1e-5), "mismatch vs reference"

    print("KERNEL_OK")
</pallas_src>

<mosaic_0001>
module attributes {stable_mosaic.version = 11 : i64} {
  func.func @_three_plane_kernel(%arg0: i32, %arg1: memref<6xf32, #tpu.memory_space<smem>>, %arg2: memref<3xf32, #tpu.memory_space<smem>>, %arg3: memref<2x128xf32, #tpu.memory_space<vmem>>, %arg4: memref<3x128xf32, #tpu.memory_space<vmem>>) attributes {dimension_semantics = [#tpu.dimension_semantics<parallel>], iteration_bounds = array<i64: 2>, scalar_prefetch = 0 : i64, scratch_operands = 0 : i64, tpu.core_type = #tpu.core_type<tc>, window_params = [{transform_indices = @transform_0, window_bounds = array<i64: 6>}, {transform_indices = @transform_1, window_bounds = array<i64: 3>}, {transform_indices = @transform_2, window_bounds = array<i64: 2, 128>}, {transform_indices = @transform_3, window_bounds = array<i64: 3, 128>}]} {
    %c0 = arith.constant 0 : index
    %c0_0 = arith.constant 0 : index
    %0 = vector.load %arg3[%c0, %c0_0] : memref<2x128xf32, #tpu.memory_space<vmem>>, vector<1x128xf32>
    %c1 = arith.constant 1 : index
    %c0_1 = arith.constant 0 : index
    %1 = vector.load %arg3[%c1, %c0_1] : memref<2x128xf32, #tpu.memory_space<vmem>>, vector<1x128xf32>
    %c0_2 = arith.constant 0 : index
    %2 = memref.load %arg1[%c0_2] : memref<6xf32, #tpu.memory_space<smem>>
    %c1_3 = arith.constant 1 : index
    %3 = memref.load %arg1[%c1_3] : memref<6xf32, #tpu.memory_space<smem>>
    %4 = vector.broadcast %2 : f32 to vector<1x128xf32>
    %5 = arith.mulf %0, %4 : vector<1x128xf32>
    %6 = vector.broadcast %3 : f32 to vector<1x128xf32>
    %7 = arith.mulf %1, %6 : vector<1x128xf32>
    %8 = arith.addf %5, %7 : vector<1x128xf32>
    %c0_4 = arith.constant 0 : index
    %9 = memref.load %arg2[%c0_4] : memref<3xf32, #tpu.memory_space<smem>>
    %10 = vector.broadcast %9 : f32 to vector<1x128xf32>
    %11 = arith.addf %8, %10 : vector<1x128xf32>
    %cst = arith.constant 0.000000e+00 : f32
    %12 = vector.broadcast %cst : f32 to vector<1x128xf32>
    %13 = arith.subf %12, %11 : vector<1x128xf32>
    %14 = math.exp %13 : vector<1x128xf32>
    %cst_5 = arith.constant 1.000000e+00 : f32
    %15 = vector.broadcast %cst_5 : f32 to vector<1x128xf32>
    %16 = arith.addf %15, %14 : vector<1x128xf32>
    %cst_6 = arith.constant 1.000000e+00 : f32
    %17 = vector.broadcast %cst_6 : f32 to vector<1x128xf32>
    %18 = arith.divf %17, %16 : vector<1x128xf32>
    %c2 = arith.constant 2 : index
    %19 = memref.load %arg1[%c2] : memref<6xf32, #tpu.memory_space<smem>>
    %c3 = arith.constant 3 : index
    %20 = memref.load %arg1[%c3] : memref<6xf32, #tpu.memory_space<smem>>
    %21 = vector.broadcast %19 : f32 to vector<1x128xf32>
    %22 = arith.mulf %0, %21 : vector<1x128xf32>
    %23 = vector.broadcast %20 : f32 to vector<1x128xf32>
    %24 = arith.mulf %1, %23 : vector<1x128xf32>
    %25 = arith.addf %22, %24 : vector<1x128xf32>
    %c1_7 = arith.constant 1 : index
    %26 = memref.load %arg2[%c1_7] : memref<3xf32, #tpu.memory_space<smem>>
    %27 = vector.broadcast %26 : f32 to vector<1x128xf32>
    %28 = arith.addf %25, %27 : vector<1x128xf32>
    %cst_8 = arith.constant 0.000000e+00 : f32
    %29 = vector.broadcast %cst_8 : f32 to vector<1x128xf32>
    %30 = arith.subf %29, %28 : vector<1x128xf32>
    %31 = math.exp %30 : vector<1x128xf32>
    %cst_9 = arith.constant 1.000000e+00 : f32
    %32 = vector.broadcast %cst_9 : f32 to vector<1x128xf32>
    %33 = arith.addf %32, %31 : vector<1x128xf32>
    %cst_10 = arith.constant 1.000000e+00 : f32
    %34 = vector.broadcast %cst_10 : f32 to vector<1x128xf32>
    %35 = arith.divf %34, %33 : vector<1x128xf32>
    %c4 = arith.constant 4 : index
    %36 = memref.load %arg1[%c4] : memref<6xf32, #tpu.memory_space<smem>>
    %c5 = arith.constant 5 : index
    %37 = memref.load %arg1[%c5] : memref<6xf32, #tpu.memory_space<smem>>
    %38 = vector.broadcast %36 : f32 to vector<1x128xf32>
    %39 = arith.mulf %0, %38 : vector<1x128xf32>
    %40 = vector.broadcast %37 : f32 to vector<1x128xf32>
    %41 = arith.mulf %1, %40 : vector<1x128xf32>
    %42 = arith.addf %39, %41 : vector<1x128xf32>
    %c2_11 = arith.constant 2 : index
    %43 = memref.load %arg2[%c2_11] : memref<3xf32, #tpu.memory_space<smem>>
    %44 = vector.broadcast %43 : f32 to vector<1x128xf32>
    %45 = arith.addf %42, %44 : vector<1x128xf32>
    %cst_12 = arith.constant 0.000000e+00 : f32
    %46 = vector.broadcast %cst_12 : f32 to vector<1x128xf32>
    %47 = arith.subf %46, %45 : vector<1x128xf32>
    %48 = math.exp %47 : vector<1x128xf32>
    %cst_13 = arith.constant 1.000000e+00 : f32
    %49 = vector.broadcast %cst_13 : f32 to vector<1x128xf32>
    %50 = arith.addf %49, %48 : vector<1x128xf32>
    %cst_14 = arith.constant 1.000000e+00 : f32
    %51 = vector.broadcast %cst_14 : f32 to vector<1x128xf32>
    %52 = arith.divf %51, %50 : vector<1x128xf32>
    %53 = tpu.concatenate %18, %35, %52 in 0 : vector<1x128xf32>, vector<1x128xf32>, vector<1x128xf32> -> vector<3x128xf32>
    %c0_15 = arith.constant 0 : index
    %c0_16 = arith.constant 0 : index
    %54 = vector.load %arg4[%c0_15, %c0_16] : memref<3x128xf32, #tpu.memory_space<vmem>>, vector<3x128xf32>
    tpu.vector_store %arg4[%c0_15, %c0_16], %53 {strides = array<i32>} : memref<3x128xf32, #tpu.memory_space<vmem>>, vector<3x128xf32>,
    return
  }
  func.func @transform_0(%arg0: i32) -> i32 {
    %c0_i32 = arith.constant 0 : i32
    %c0_i32_0 = arith.constant 0 : i32
    return %c0_i32 : i32
  }
  func.func @transform_1(%arg0: i32) -> i32 {
    %c0_i32 = arith.constant 0 : i32
    %c0_i32_0 = arith.constant 0 : i32
    return %c0_i32 : i32
  }
  func.func @transform_2(%arg0: i32) -> (i32, i32) {
    %c0_i32 = arith.constant 0 : i32
    %c0_i32_0 = arith.constant 0 : i32
    return %c0_i32, %arg0 : i32, i32
  }
  func.func @transform_3(%arg0: i32) -> (i32, i32) {
    %c0_i32 = arith.constant 0 : i32
    %c0_i32_0 = arith.constant 0 : i32
    return %c0_i32, %arg0 : i32, i32
  }
}

</mosaic_0001>

<llo_original>
// kernel: tpu_custom_call.1
$region0: #{tpu_custom_call.1}
  #allocation0 [shape = 'u32[]', space=smem, size = 0x4, offset = 0x4, fixed_abs, tag = 'smem constant byte address 0x4 - core index']
  #allocation1 [shape = 'u32[144,128]{1,0:T(1,128)}', space=vmem, size = 0x12000, scoped, tag = 'internal scratch']
  %s0 = inlined_call_operand.hbm [shape: f32[6], index: 0, kind: input, shape index: {}]
  %s1 = inlined_call_operand.vmem [shape: f32[3], index: 1, kind: input, shape index: {}]
  %s2 = inlined_call_operand.vmem [shape: f32[2,256], index: 2, kind: input, shape index: {}]
  %s3 = inlined_call_operand.hbm [shape: f32[3,256], index: 3, kind: output, shape index: {}]
  %s4 = sld [smem:[#allocation0]]
  $region53: #{tpu_custom_call.1} parent=0
    _
  %s6 = ssub.s32 1, %s4
  %s7 = scalar_select 0, %s6, %s4
  $region1: #{tpu_custom_call.1} parent=0
    #allocation2 [shape = 'u8[512]{0}', space=smem, size = 0x200, scoped, tag = 'input window, operand 0, single buffered']
    #allocation3 [shape = 's32[2]{0}', space=sflag, size = 0x8, scoped, tag = 'scoped memory for tpu_custom_call.1']
    #allocation4 [shape = 's32[2]{0}', space=sflag, size = 0x8, scoped, tag = 'scoped memory for tpu_custom_call.1']
    #allocation5 [shape = 's32[2]{0}', space=sflag, size = 0x8, scoped, tag = 'scoped memory for tpu_custom_call.1']
    #allocation6 [shape = 'u8[512]{0}', space=smem, size = 0x200, scoped, tag = 'input window, operand 1, single buffered']
    #allocation7 [shape = 'u8[4096]{0}', space=vmem, size = 0x1000, scoped, tag = 'output window, operand 0']
    %8 = vsyncpa [#allocation4], 0
    %9 = vsyncpa [#allocation5], 0
    %10 = vsyncpa [#allocation3], 0
    %s11 = scalar_lea.sflag [#allocation3], 1
    %12 = vsyncpa %s11, 0
    loop: start=0, step=1, limit=4
    $region2: #{tpu_custom_call.1} parent=1 // loop_pre_header
      _
    $region3: #{tpu_custom_call.1} parent=1 // loop_header
      %s14 = sphi 0, %s18
      %p15 = scmp.ge.s32.totalorder %s14, 4
      %s22 = sphi 0, %s22
      %s24 = sphi 0, %s22
      %s25 = sphi 0, %s24
      %s39 = sphi 0, %s25
      %s43 = sphi 0, %s43
      %s45 = sphi 0, %s43
      %s46 = sphi 0, %s45
      %s60 = sphi 0, %s46
      %s66 = sphi 0, %s68
      %s69 = sphi 0, %s66
      %s70 = sphi 0, %s69
      %s86 = sphi 0, %s70
      %s92 = sphi 0, %s94
      %s95 = sphi 0, %s92
      %s96 = sphi 0, %s95
      %s112 = sphi 0, %s96
    $region4: #{tpu_custom_call.1} parent=1 // loop_header_branch
      %17 = sbr.rel (%p15) target = $region8
    $region5: #{tpu_custom_call.1} parent=1 // loop_body
      %s19 = ssub.s32 %s14, 1
      %s20 = ssub.s32 %s14, 2
      %s21 = sadd.s32 %s14, 1
      %s23 = sadd.s32 %s22, 1
      %p26 = scmp.eq.s32.totalorder %s14, 1
      %p27 = scmp.ne.s32.totalorder %s22, %s24
      %p28 = scmp.eq.s32.totalorder %s14, 0
      %p29 = por %p27, %p28
      %p30 = scmp.ne.s32.totalorder %s22, %s24
      %p31 = scmp.eq.s32.totalorder %s19, 1
      %p32 = por %p30, %p31
      %p33 = scmp.ne.s32.totalorder %s24, %s25
      %p34 = scmp.eq.s32.totalorder %s19, 0
      %p35 = por %p33, %p34
      %p36 = scmp.ne.s32.totalorder %s24, %s25
      %p37 = scmp.eq.s32.totalorder %s20, 1
      %p38 = por %p36, %p37
      %p40 = scmp.ne.s32.totalorder %s25, %s39
      %p41 = scmp.eq.s32.totalorder %s20, 0
      %p42 = por %p40, %p41
      %s44 = sadd.s32 %s43, 1
      %p47 = scmp.eq.s32.totalorder %s14, 1
      %p48 = scmp.ne.s32.totalorder %s43, %s45
      %p49 = scmp.eq.s32.totalorder %s14, 0
      %p50 = por %p48, %p49
      %p51 = scmp.ne.s32.totalorder %s43, %s45
      %p52 = scmp.eq.s32.totalorder %s19, 1
      %p53 = por %p51, %p52
      %p54 = scmp.ne.s32.totalorder %s45, %s46
      %p55 = scmp.eq.s32.totalorder %s19, 0
      %p56 = por %p54, %p55
      %p57 = scmp.ne.s32.totalorder %s45, %s46
      %p58 = scmp.eq.s32.totalorder %s20, 1
      %p59 = por %p57, %p58
      %p61 = scmp.ne.s32.totalorder %s46, %s60
      %p62 = scmp.eq.s32.totalorder %s20, 0
      %p63 = por %p61, %p62
      %s64 = ssub.s32 %s14, %s21
      %p65 = scmp.eq.s32.totalorder %s64, 0
      %s67 = sadd.s32 %s66, 1
      %s68 = scalar_select %p65, %s66, %s67
      %p71 = pneg %p65
      %p72 = scmp.eq.s32.totalorder %s14, 1
      %p73 = por %p71, %p72
      %p74 = scmp.ne.s32.totalorder %s66, %s69
      %p75 = scmp.eq.s32.totalorder %s14, 0
      %p76 = por %p74, %p75
      %p77 = scmp.ne.s32.totalorder %s66, %s69
      %p78 = scmp.eq.s32.totalorder %s19, 1
      %p79 = por %p77, %p78
      %p80 = scmp.ne.s32.totalorder %s69, %s70
      %p81 = scmp.eq.s32.totalorder %s19, 0
      %p82 = por %p80, %p81
      %p83 = scmp.ne.s32.totalorder %s69, %s70
      %p84 = scmp.eq.s32.totalorder %s20, 1
      %p85 = por %p83, %p84
      %p87 = scmp.ne.s32.totalorder %s70, %s86
      %p88 = scmp.eq.s32.totalorder %s20, 0
      %p89 = por %p87, %p88
      %s90 = ssub.s32 %s14, %s21
      %p91 = scmp.eq.s32.totalorder %s90, 0
      %s93 = sadd.s32 %s92, 1
      %s94 = scalar_select %p91, %s92, %s93
      %p97 = pneg %p91
      %p98 = scmp.eq.s32.totalorder %s14, 1
      %p99 = por %p97, %p98
      %p100 = scmp.ne.s32.totalorder %s92, %s95
      %p101 = scmp.eq.s32.totalorder %s14, 0
      %p102 = por %p100, %p101
      %p103 = scmp.ne.s32.totalorder %s92, %s95
      %p104 = scmp.eq.s32.totalorder %s19, 1
      %p105 = por %p103, %p104
      %p106 = scmp.ne.s32.totalorder %s95, %s96
      %p107 = scmp.eq.s32.totalorder %s19, 0
      %p108 = por %p106, %p107
      %p109 = scmp.ne.s32.totalorder %s95, %s96
      %p110 = scmp.eq.s32.totalorder %s20, 1
      %p111 = por %p109, %p110
      %p113 = scmp.ne.s32.totalorder %s96, %s112
      %p114 = scmp.eq.s32.totalorder %s20, 0
      %p115 = por %p113, %p114
      %p116 = scmp.le.s32.totalorder 1, %s14
      %p117 = scmp.lt.s32.totalorder %s14, 3
      %p118 = pnand %p116, %p117
      %p119 = pneg %p118
      // Predicated region
      $region9: #{tpu_custom_call.1} parent=5 // pred_check
        _
      $region10: #{tpu_custom_call.1} parent=5 // pred_check_branch
        %121 = sbr.rel (%p118) target = $region12
      $region11: #{tpu_custom_call.1} parent=5 // pred_region
        %s122 = ssub.s32 %s14, 1
        // Predicated region
        $region13: #{tpu_custom_call.1} parent=11 // pred_check
          %p123 = pneg %p35
        $region14: #{tpu_custom_call.1} parent=11 // pred_check_branch
          %125 = sbr.rel (%p123) target = $region16
        $region15: #{tpu_custom_call.1} parent=11 // pred_region
          %s127 = ssub.s32 16, 16
          %128 = vsyncadd [#allocation4], %s127
          %131 = dma.hbm_to_smem %s0, 16, [#allocation2], [#allocation4]
        $region16: #{tpu_custom_call.1} parent=11 // pred_fallthru
          _
        // Predicated region
        $region17: #{tpu_custom_call.1} parent=11 // pred_check
          %p132 = pneg %p56
        $region18: #{tpu_custom_call.1} parent=11 // pred_check_branch
          %134 = sbr.rel (%p132) target = $region20
        $region19: #{tpu_custom_call.1} parent=11 // pred_region
          %s136 = ssub.s32 16, 16
          %137 = vsyncadd [#allocation5], %s136
          %s139 = sshll.u32 %s1, 4
          %s140 = int_to_ptr.vmem [resolvable:$true] %s139
          %142 = dma.vmem_to_smem %s140, 16, [#allocation6], [#allocation5]
        $region20: #{tpu_custom_call.1} parent=11 // pred_fallthru
          _
      $region12: #{tpu_custom_call.1} parent=5 // pred_fallthru
        _
      %p143 = scmp.lt.s32.totalorder %s14, 2
      // Predicated region
      $region21: #{tpu_custom_call.1} parent=5 // pred_check
        %p144 = pneg %p143
      $region22: #{tpu_custom_call.1} parent=5 // pred_check_branch
        %146 = sbr.rel (%p144) target = $region24
      $region23: #{tpu_custom_call.1} parent=5 // pred_region
        // Predicated region
        $region25: #{tpu_custom_call.1} parent=23 // pred_check
          %p147 = pneg %p76
        $region26: #{tpu_custom_call.1} parent=23 // pred_check_branch
          %149 = sbr.rel (%p147) target = $region28
        $region27: #{tpu_custom_call.1} parent=23 // pred_region
          %p150 = scmp.lt.s32.totalorder %s14, 1
          %s151 = scalar_select %p150, %s14, 1
          %s152 = smul.addr %s151, 2
          %s153 = scalar_lea.vmem %s2, %s152
        $region28: #{tpu_custom_call.1} parent=23 // pred_fallthru
          _
      $region24: #{tpu_custom_call.1} parent=5 // pred_fallthru
        _
      %p154 = scmp.le.s32.totalorder 1, %s14
      %p155 = scmp.lt.s32.totalorder %s14, 3
      %p156 = pnand %p154, %p155
      %p157 = pneg %p156
      // Predicated region
      $region29: #{tpu_custom_call.1} parent=5 // pred_check
        _
      $region30: #{tpu_custom_call.1} parent=5 // pred_check_branch
        %159 = sbr.rel (%p156) target = $region32
      $region31: #{tpu_custom_call.1} parent=5 // pred_region
        %s160 = ssub.s32 %s14, 1
        // Predicated region
        $region33: #{tpu_custom_call.1} parent=31 // pred_check
          %p161 = pneg %p35
        $region34: #{tpu_custom_call.1} parent=31 // pred_check_branch
          %163 = sbr.rel (%p161) target = $region36
        $region35: #{tpu_custom_call.1} parent=31 // pred_region
          %164 = dma.done [#allocation4], 16
        $region36: #{tpu_custom_call.1} parent=31 // pred_fallthru
          _
        // Predicated region
        $region37: #{tpu_custom_call.1} parent=31 // pred_check
          %p165 = pneg %p56
        $region38: #{tpu_custom_call.1} parent=31 // pred_check_branch
          %167 = sbr.rel (%p165) target = $region40
        $region39: #{tpu_custom_call.1} parent=31 // pred_region
          %168 = dma.done [#allocation5], 16
        $region40: #{tpu_custom_call.1} parent=31 // pred_fallthru
          _
        %169 = sfence
        %p170 = pneg %p35
        %p171 = pneg %p32
        %p172 = pneg %p56
        %p173 = pneg %p53
        %p174 = scmp.lt.s32.totalorder %s19, 1
        %s175 = scalar_select %p174, %s19, 1
        %s176 = smul.addr %s175, 2
        %s177 = scalar_lea.vmem %s2, %s176
        %p178 = pneg %p82
        %p179 = pneg %p79
        %p180 = pneg %p108
        %p181 = pneg %p105
        %s182 = sand.u32 %s95, 1
        %s183 = scalar_lea.sflag [#allocation3], %s182
        %s184 = sand.u32 %s95, 1
        %s185 = smul.addr %s184, 4
        %s186 = scalar_lea.vmem [#allocation7], %s185
        %p187 = scmp.lt.s32.totalorder %s19, 1
        %s188 = scalar_select %p187, %s19, 1
        %s189 = smul.addr %s188, 2
        %s190 = scalar_lea.vmem %s2, %s189
        %v191 = vld [vmem:[%s190] sm:$0x1]
        %v192 = vld [vmem:[%s190 + $0x1] sm:$0x1]
        %s193 = sld [smem:[#allocation2]]
        %s194 = sld [smem:[#allocation2 + $0x1]]
        %v195 = vstv %s193
        %v196 = vmul.f32 %v191, %v195
        %v197 = vstv %s194
        %v198 = vmul.f32 %v192, %v197
        %v199 = vadd.f32 %v196, %v198
        %s200 = sld [smem:[#allocation6]]
        %v201 = vstv %s200
        %v202 = vadd.f32 %v199, %v201
        %v203 = vsub.f32 0.0, %v202
        %v204 = vmul.f32 %v203, 1.442695
        %v205 = vpow.pop %v204
        %v206 = vadd.f32 %v205, 1.0
        %v207 = vrcp.pop %v206
        %v208 = vmul.f32 1.0, %v207
        %s209 = sld [smem:[#allocation2 + $0x2]]
        %s210 = sld [smem:[#allocation2 + $0x3]]
        %v211 = vstv %s209
        %v212 = vmul.f32 %v191, %v211
        %v213 = vstv %s210
        %v214 = vmul.f32 %v192, %v213
        %v215 = vadd.f32 %v212, %v214
        %s216 = sld [smem:[#allocation6 + $0x1]]
        %v217 = vstv %s216
        %v218 = vadd.f32 %v215, %v217
        %v219 = vsub.f32 0.0, %v218
        %v220 = vmul.f32 %v219, 1.442695
        %v221 = vpow.pop %v220
        %v222 = vadd.f32 %v221, 1.0
        %v223 = vrcp.pop %v222
        %v224 = vmul.f32 1.0, %v223
        %s225 = sld [smem:[#allocation2 + $0x4]]
        %s226 = sld [smem:[#allocation2 + $0x5]]
        %v227 = vstv %s225
        %v228 = vmul.f32 %v191, %v227
        %v229 = vstv %s226
        %v230 = vmul.f32 %v192, %v229
        %v231 = vadd.f32 %v228, %v230
        %s232 = sld [smem:[#allocation6 + $0x2]]
        %v233 = vstv %s232
        %v234 = vadd.f32 %v231, %v233
        %v235 = vsub.f32 0.0, %v234
        %v236 = vmul.f32 %v235, 1.442695
        %v237 = vpow.pop %v236
        %v238 = vadd.f32 %v237, 1.0
        %v239 = vrcp.pop %v238
        %v240 = vmul.f32 1.0, %v239
        %v242 = vrot.slane %v224, 7
        %v245 = vrot.slane %v240, 6
        %vm247 = vcmask 1040384
        %v248 = vsel %vm247, %v208, %v242
        %vm249 = vcmask 1041408
        %v250 = vsel %vm249, %v248, %v245
        %251 = vst [vmem:[%s186] sm:$0x7] %v250
        %s252 = sand.u32 %s95, 1
        %s253 = scalar_lea.sflag [#allocation3], %s252
        %s254 = sand.u32 %s95, 1
        %s255 = smul.addr %s254, 4
        %s256 = scalar_lea.vmem [#allocation7], %s255
        // Predicated region
        $region41: #{tpu_custom_call.1} parent=31 // pred_check
          %p257 = pneg %p105
        $region42: #{tpu_custom_call.1} parent=31 // pred_check_branch
          %259 = sbr.rel (%p257) target = $region44
        $region43: #{tpu_custom_call.1} parent=31 // pred_region
          %s261 = ssub.s32 64, 64
          %262 = vsyncadd %s253, %s261
          %s263 = smul.addr %s19, 64
          %s264 = scalar_lea.hbm %s3, %s263
          %s266 = sshll.u32 %s256, 4
          %s267 = int_to_ptr.vmem [resolvable:$true] %s266
          %269 = dma.vmem_to_hbm [thread:$0]  %s267, 64, %s264, %s253
        $region44: #{tpu_custom_call.1} parent=31 // pred_fallthru
          _
      $region32: #{tpu_custom_call.1} parent=5 // pred_fallthru
        _
      %p270 = scmp.le.s32.totalorder 2, %s14
      // Predicated region
      $region45: #{tpu_custom_call.1} parent=5 // pred_check
        %p271 = pneg %p270
      $region46: #{tpu_custom_call.1} parent=5 // pred_check_branch
        %273 = sbr.rel (%p271) target = $region48
      $region47: #{tpu_custom_call.1} parent=5 // pred_region
        %s274 = ssub.s32 %s14, 2
        // Predicated region
        $region49: #{tpu_custom_call.1} parent=47 // pred_check
          %p275 = pneg %p111
        $region50: #{tpu_custom_call.1} parent=47 // pred_check_branch
          %277 = sbr.rel (%p275) target = $region52
        $region51: #{tpu_custom_call.1} parent=47 // pred_region
          %s278 = sand.u32 %s96, 1
          %s279 = scalar_lea.sflag [#allocation3], %s278
          %s280 = sand.u32 %s96, 1
          %s281 = smul.addr %s280, 4
          %s282 = scalar_lea.vmem [#allocation7], %s281
          %283 = dma.done %s279, 64
        $region52: #{tpu_custom_call.1} parent=47 // pred_fallthru
          _
      $region48: #{tpu_custom_call.1} parent=5 // pred_fallthru
        _
    $region6: #{tpu_custom_call.1} parent=1 // loop_footer
      %s18 = sadd.s32 1, %s14
    $region7: #{tpu_custom_call.1} parent=1 // loop_footer_branch
      %13 = sbr.rel target = $region3
    $region8: #{tpu_custom_call.1} parent=1 // loop_exit
      _
    %284 = vsyncpa [#allocation3], 1
    %s285 = scalar_lea.sflag [#allocation3], 1
    %286 = vsyncpa %s285, 1
    %287 = vsyncpa [#allocation4], 1
    %s288 = scalar_lea.sflag [#allocation4], 1
    %289 = vsyncpa %s288, 1
    %290 = vsyncpa [#allocation5], 1
    %s291 = scalar_lea.sflag [#allocation5], 1
    %292 = vsyncpa %s291, 1

</llo_original>
